<compile_context>
chip_gen: v6e
topology: v6e:2x2x1
jax: 0.10.0
libtpu: 0.0.40
codegen_flags: <defaults>
</compile_context>

<pallas_src>
import functools

import jax
import jax.numpy as jnp
from jax.experimental import pallas as pl
from jax.experimental.pallas import tpu as pltpu

_SUBLANE = 8                      # f32 sublane tile height
_VMEM_BUDGET_BYTES = 16 * 1024 * 1024  # conservative: v7x has 64 MiB phys / 32 MiB scoped


def _rnn_chunk_kernel(xs_ref, wt_ref, b_ref, h_ref, pre_ref, *, t_blk, b_pad, f_in):
    """One grid step == one chunk of `t_blk` timesteps.

    xs_ref : (t_blk * b_pad, F_in)  time-flattened, batch-padded input chunk
    wt_ref : (F_in, F_out)          pre-transposed weight (constant index_map)
    b_ref  : (1, F_out)             bias (constant index_map)
    h_ref  : (b_pad, F_out)         hidden state; VMEM-resident across the whole
                                    time grid (constant-index out_spec).
    pre_ref: (t_blk * b_pad, F_out) VMEM scratch staging the projected chunk so
                                    vreg pressure stays bounded for any t_blk.
    """
    c = pl.program_id(0)

    @pl.when(c == 0)
    def _():
        h_ref[...] = jnp.zeros_like(h_ref)  # h0 = zeros, as in MyRNNLoop

    x = xs_ref[...]
    if f_in <= 8:
        # Tiny K: keep the projection on the VPU. F_in broadcast FMAs with the
        # bias folded into the accumulator init — avoids MXU fill/FIFO latency
        # on the critical path and the separate bias broadcast-add.
        acc = x[:, 0:1] * wt_ref[0:1, :] + b_ref[...]
        for k in range(1, f_in):
            acc = acc + x[:, k:k + 1] * wt_ref[k:k + 1, :]
    else:
        # General fallback: one MXU matmul for the whole chunk.
        acc = jnp.dot(x, wt_ref[...], preferred_element_type=jnp.float32)
        acc = acc + b_ref[...]
    pre_ref[...] = acc

    # Fully-unrolled recurrence over the chunk (t_blk is a small Python const).
    # Each per-step slice of pre_ref is a static, sublane-aligned (b_pad, F_out)
    # load; only `h` plus one slice are live at a time, so no spills.
    h = h_ref[...]
    for t in range(t_blk):
        h = jnp.tanh(pre_ref[t * b_pad:(t + 1) * b_pad, :] + h)
    h_ref[...] = h


def _pick_time_block(seq_len, b_pad, f_in, f_out, vmem_budget_bytes):
    """Largest divisor of seq_len whose per-chunk VMEM footprint fits the budget.

    Per-chunk footprint: input chunk is double-buffered (2 x t_blk*b_pad*F_in*4B)
    plus the pre_ref scratch (t_blk*b_pad*F_out*4B). Whole sequence -> grid=(1,).
    """
    per_t = b_pad * (2 * f_in + f_out) * 4
    max_t = max(1, vmem_budget_bytes // per_t)
    if seq_len <= max_t:
        return seq_len
    for cand in range(min(seq_len, max_t), 0, -1):
        if seq_len % cand == 0:
            return cand
    return 1


def my_rnn_loop_forward(xs, w, b, *, time_block=None):
    """Pallas equivalent of MyRNNLoop.forward.

    xs: (T, B, F_in) f32, w: (F_out, F_in) torch.nn.Linear layout, b: (F_out,).
    Returns (y, h); both equal the final hidden state, shape (B, F_out).
    """
    T, B, F_in = xs.shape
    F_out = w.shape[0]

    # Pad batch up to the f32 sublane tile so all blocks are TPU friendly.
    b_pad = ((B + _SUBLANE - 1) // _SUBLANE) * _SUBLANE
    if b_pad != B:
        xs = jnp.pad(xs, ((0, 0), (0, b_pad - B), (0, 0)))

    # Flatten (time, batch) so each chunk is a single 2-D slab; pre-transpose W
    # at trace time (free) so there is no in-kernel transpose.
    xs_flat = xs.reshape(T * b_pad, F_in)
    w_t = w.T                       # (F_in, F_out)
    b2d = b.reshape(1, F_out)

    if time_block is None:
        t_blk = _pick_time_block(T, b_pad, F_in, F_out, _VMEM_BUDGET_BYTES)
    else:
        t_blk = _pick_time_block(min(T, time_block), b_pad, F_in, F_out,
                                 _VMEM_BUDGET_BYTES)
        while T % t_blk:
            t_blk -= 1
    num_chunks = T // t_blk        # == 1 for T=8: whole sequence in one grid step

    kernel = functools.partial(_rnn_chunk_kernel, t_blk=t_blk, b_pad=b_pad,
                               f_in=F_in)

    h_final = pl.pallas_call(
        kernel,
        out_shape=jax.ShapeDtypeStruct((b_pad, F_out), jnp.float32),
        grid=(num_chunks,),
        in_specs=[
            pl.BlockSpec((t_blk * b_pad, F_in), lambda c: (c, 0)),  # time chunk
            pl.BlockSpec((F_in, F_out), lambda c: (0, 0)),          # W^T, loaded once
            pl.BlockSpec((1, F_out), lambda c: (0, 0)),             # bias, loaded once
        ],
        # Constant index_map -> h stays resident in VMEM across all time chunks.
        out_specs=pl.BlockSpec((b_pad, F_out), lambda c: (0, 0)),
        scratch_shapes=[pltpu.VMEM((t_blk * b_pad, F_out), jnp.float32)],
        compiler_params=pltpu.CompilerParams(
            dimension_semantics=("arbitrary",),  # time is sequential
        ),
    )(xs_flat, w_t, b2d)

    new_h = h_final[:B]
    return new_h, new_h


if __name__ == "__main__":
    key = jax.random.PRNGKey(0)
    k_xs, k_w, k_b = jax.random.split(key, 3)

    T, B, F = 8, 3, 4  # MyRNNLoop: h = zeros(3, 4), Linear(4, 4), seq len 8
    xs = jax.random.normal(k_xs, (T, B, F), dtype=jnp.float32)
    # Deterministic params mimicking torch.nn.Linear init uniform(-1/sqrt(F), 1/sqrt(F)).
    bound = 1.0 / jnp.sqrt(jnp.float32(F))
    w = jax.random.uniform(k_w, (F, F), minval=-bound, maxval=bound, dtype=jnp.float32)
    b = jax.random.uniform(k_b, (F,), minval=-bound, maxval=bound, dtype=jnp.float32)

    fwd = jax.jit(my_rnn_loop_forward)
    y, h = fwd(xs, w, b)
    jax.block_until_ready(y)

    # Plain-JAX reference of MyRNNLoop.forward.
    h_ref = jnp.zeros((B, F), jnp.float32)
    for i in range(T):
        h_ref = jnp.tanh(xs[i] @ w.T + b + h_ref)

    assert jnp.allclose(y, h_ref, atol=1e-5, rtol=1e-5), "y mismatch vs reference"
    assert jnp.allclose(h, h_ref, atol=1e-5, rtol=1e-5), "h mismatch vs reference"

    print("KERNEL_OK")
</pallas_src>

<mosaic_0001>
module attributes {stable_mosaic.version = 11 : i64} {
  func.func @_rnn_chunk_kernel(%arg0: i32, %arg1: memref<64x4xf32, #tpu.memory_space<vmem>>, %arg2: memref<4x4xf32, #tpu.memory_space<vmem>>, %arg3: memref<1x4xf32, #tpu.memory_space<vmem>>, %arg4: memref<8x4xf32, #tpu.memory_space<vmem>>, %arg5: memref<64x4xf32, #tpu.memory_space<vmem>>) attributes {dimension_semantics = [#tpu.dimension_semantics<arbitrary>], iteration_bounds = array<i64: 1>, scalar_prefetch = 0 : i64, scratch_operands = 1 : i64, tpu.core_type = #tpu.core_type<tc>, window_params = [{transform_indices = @transform_0, window_bounds = array<i64: 64, 4>}, {pipeline_mode = #tpu.pipeline_mode<synchronous>, transform_indices = @transform_1, window_bounds = array<i64: 4, 4>}, {pipeline_mode = #tpu.pipeline_mode<synchronous>, transform_indices = @transform_2, window_bounds = array<i64: 1, 4>}, {pipeline_mode = #tpu.pipeline_mode<synchronous>, transform_indices = @transform_3, window_bounds = array<i64: 8, 4>}]} {
    %c0_i32 = arith.constant 0 : i32
    %0 = arith.cmpi eq, %arg0, %c0_i32 : i32
    %1 = arith.extui %0 : i1 to i32
    %c0_i32_0 = arith.constant 0 : i32
    %2 = arith.cmpi ne, %1, %c0_i32_0 : i32
    scf.if %2 {
      %cst = arith.constant 0.000000e+00 : f32
      %57 = vector.broadcast %cst : f32 to vector<8x4xf32>
      %c0_24 = arith.constant 0 : index
      %c0_25 = arith.constant 0 : index
      %58 = vector.load %arg4[%c0_24, %c0_25] : memref<8x4xf32, #tpu.memory_space<vmem>>, vector<8x4xf32>
      tpu.vector_store %arg4[%c0_24, %c0_25], %57 {strides = array<i32>} : memref<8x4xf32, #tpu.memory_space<vmem>>, vector<8x4xf32>,
    } else {
    }
    %c0 = arith.constant 0 : index
    %c0_1 = arith.constant 0 : index
    %3 = vector.load %arg1[%c0, %c0_1] : memref<64x4xf32, #tpu.memory_space<vmem>>, vector<64x4xf32>
    %4 = vector.extract_strided_slice %3 {offsets = [0, 0], sizes = [64, 1], strides = [1, 1]} : vector<64x4xf32> to vector<64x1xf32>
    %c0_2 = arith.constant 0 : index
    %c0_3 = arith.constant 0 : index
    %5 = vector.load %arg2[%c0_2, %c0_3] : memref<4x4xf32, #tpu.memory_space<vmem>>, vector<1x4xf32>
    %6 = vector.broadcast %4 : vector<64x1xf32> to vector<64x4xf32>
    %7 = vector.broadcast %5 : vector<1x4xf32> to vector<64x4xf32>
    %8 = arith.mulf %6, %7 : vector<64x4xf32>
    %c0_4 = arith.constant 0 : index
    %c0_5 = arith.constant 0 : index
    %9 = vector.load %arg3[%c0_4, %c0_5] : memref<1x4xf32, #tpu.memory_space<vmem>>, vector<1x4xf32>
    %10 = vector.broadcast %9 : vector<1x4xf32> to vector<64x4xf32>
    %11 = arith.addf %8, %10 : vector<64x4xf32>
    %12 = vector.extract_strided_slice %3 {offsets = [0, 1], sizes = [64, 1], strides = [1, 1]} : vector<64x4xf32> to vector<64x1xf32>
    %c1 = arith.constant 1 : index
    %c0_6 = arith.constant 0 : index
    %13 = vector.load %arg2[%c1, %c0_6] : memref<4x4xf32, #tpu.memory_space<vmem>>, vector<1x4xf32>
    %14 = vector.broadcast %12 : vector<64x1xf32> to vector<64x4xf32>
    %15 = vector.broadcast %13 : vector<1x4xf32> to vector<64x4xf32>
    %16 = arith.mulf %14, %15 : vector<64x4xf32>
    %17 = arith.addf %11, %16 : vector<64x4xf32>
    %18 = vector.extract_strided_slice %3 {offsets = [0, 2], sizes = [64, 1], strides = [1, 1]} : vector<64x4xf32> to vector<64x1xf32>
    %c2 = arith.constant 2 : index
    %c0_7 = arith.constant 0 : index
    %19 = vector.load %arg2[%c2, %c0_7] : memref<4x4xf32, #tpu.memory_space<vmem>>, vector<1x4xf32>
    %20 = vector.broadcast %18 : vector<64x1xf32> to vector<64x4xf32>
    %21 = vector.broadcast %19 : vector<1x4xf32> to vector<64x4xf32>
    %22 = arith.mulf %20, %21 : vector<64x4xf32>
    %23 = arith.addf %17, %22 : vector<64x4xf32>
    %24 = vector.extract_strided_slice %3 {offsets = [0, 3], sizes = [64, 1], strides = [1, 1]} : vector<64x4xf32> to vector<64x1xf32>
    %c3 = arith.constant 3 : index
    %c0_8 = arith.constant 0 : index
    %25 = vector.load %arg2[%c3, %c0_8] : memref<4x4xf32, #tpu.memory_space<vmem>>, vector<1x4xf32>
    %26 = vector.broadcast %24 : vector<64x1xf32> to vector<64x4xf32>
    %27 = vector.broadcast %25 : vector<1x4xf32> to vector<64x4xf32>
    %28 = arith.mulf %26, %27 : vector<64x4xf32>
    %29 = arith.addf %23, %28 : vector<64x4xf32>
    %c0_9 = arith.constant 0 : index
    %c0_10 = arith.constant 0 : index
    %30 = vector.load %arg5[%c0_9, %c0_10] : memref<64x4xf32, #tpu.memory_space<vmem>>, vector<64x4xf32>
    tpu.vector_store %arg5[%c0_9, %c0_10], %29 {strides = array<i32>} : memref<64x4xf32, #tpu.memory_space<vmem>>, vector<64x4xf32>,
    %c0_11 = arith.constant 0 : index
    %c0_12 = arith.constant 0 : index
    %31 = vector.load %arg4[%c0_11, %c0_12] : memref<8x4xf32, #tpu.memory_space<vmem>>, vector<8x4xf32>
    %c0_13 = arith.constant 0 : index
    %c0_14 = arith.constant 0 : index
    %32 = vector.load %arg5[%c0_13, %c0_14] : memref<64x4xf32, #tpu.memory_space<vmem>>, vector<8x4xf32>
    %33 = arith.addf %32, %31 : vector<8x4xf32>
    %34 = math.tanh %33 : vector<8x4xf32>
    %c8 = arith.constant 8 : index
    %c0_15 = arith.constant 0 : index
    %35 = vector.load %arg5[%c8, %c0_15] : memref<64x4xf32, #tpu.memory_space<vmem>>, vector<8x4xf32>
    %36 = arith.addf %35, %34 : vector<8x4xf32>
    %37 = math.tanh %36 : vector<8x4xf32>
    %c16 = arith.constant 16 : index
    %c0_16 = arith.constant 0 : index
    %38 = vector.load %arg5[%c16, %c0_16] : memref<64x4xf32, #tpu.memory_space<vmem>>, vector<8x4xf32>
    %39 = arith.addf %38, %37 : vector<8x4xf32>
    %40 = math.tanh %39 : vector<8x4xf32>
    %c24 = arith.constant 24 : index
    %c0_17 = arith.constant 0 : index
    %41 = vector.load %arg5[%c24, %c0_17] : memref<64x4xf32, #tpu.memory_space<vmem>>, vector<8x4xf32>
    %42 = arith.addf %41, %40 : vector<8x4xf32>
    %43 = math.tanh %42 : vector<8x4xf32>
    %c32 = arith.constant 32 : index
    %c0_18 = arith.constant 0 : index
    %44 = vector.load %arg5[%c32, %c0_18] : memref<64x4xf32, #tpu.memory_space<vmem>>, vector<8x4xf32>
    %45 = arith.addf %44, %43 : vector<8x4xf32>
    %46 = math.tanh %45 : vector<8x4xf32>
    %c40 = arith.constant 40 : index
    %c0_19 = arith.constant 0 : index
    %47 = vector.load %arg5[%c40, %c0_19] : memref<64x4xf32, #tpu.memory_space<vmem>>, vector<8x4xf32>
    %48 = arith.addf %47, %46 : vector<8x4xf32>
    %49 = math.tanh %48 : vector<8x4xf32>
    %c48 = arith.constant 48 : index
    %c0_20 = arith.constant 0 : index
    %50 = vector.load %arg5[%c48, %c0_20] : memref<64x4xf32, #tpu.memory_space<vmem>>, vector<8x4xf32>
    %51 = arith.addf %50, %49 : vector<8x4xf32>
    %52 = math.tanh %51 : vector<8x4xf32>
    %c56 = arith.constant 56 : index
    %c0_21 = arith.constant 0 : index
    %53 = vector.load %arg5[%c56, %c0_21] : memref<64x4xf32, #tpu.memory_space<vmem>>, vector<8x4xf32>
    %54 = arith.addf %53, %52 : vector<8x4xf32>
    %55 = math.tanh %54 : vector<8x4xf32>
    %c0_22 = arith.constant 0 : index
    %c0_23 = arith.constant 0 : index
    %56 = vector.load %arg4[%c0_22, %c0_23] : memref<8x4xf32, #tpu.memory_space<vmem>>, vector<8x4xf32>
    tpu.vector_store %arg4[%c0_22, %c0_23], %55 {strides = array<i32>} : memref<8x4xf32, #tpu.memory_space<vmem>>, vector<8x4xf32>,
    return
  }
  func.func @transform_0(%arg0: i32) -> (i32, i32) {
    %c0_i32 = arith.constant 0 : i32
    %c0_i32_0 = arith.constant 0 : i32
    return %arg0, %c0_i32 : i32, i32
  }
  func.func @transform_1(%arg0: i32) -> (i32, i32) {
    %c0_i32 = arith.constant 0 : i32
    %c0_i32_0 = arith.constant 0 : i32
    %c0_i32_1 = arith.constant 0 : i32
    return %c0_i32, %c0_i32_0 : i32, i32
  }
  func.func @transform_2(%arg0: i32) -> (i32, i32) {
    %c0_i32 = arith.constant 0 : i32
    %c0_i32_0 = arith.constant 0 : i32
    %c0_i32_1 = arith.constant 0 : i32
    return %c0_i32, %c0_i32_0 : i32, i32
  }
  func.func @transform_3(%arg0: i32) -> (i32, i32) {
    %c0_i32 = arith.constant 0 : i32
    %c0_i32_0 = arith.constant 0 : i32
    %c0_i32_1 = arith.constant 0 : i32
    return %c0_i32, %c0_i32_0 : i32, i32
  }
}

</mosaic_0001>

<llo_original>
// kernel: my_rnn_loop_forward.1
$region0: #{my_rnn_loop_forward.1}
  #allocation0 [shape = 'u32[]', space=smem, size = 0x4, offset = 0x4, fixed_abs, tag = 'smem constant byte address 0x4 - core index']
  #allocation1 [shape = 'u32[144,128]{1,0:T(1,128)}', space=vmem, size = 0x12000, scoped, tag = 'internal scratch']
  #allocation2 [shape = 'f32[64,4]{1,0:T(8,128)}', space=vmem, size = 0x8000, scoped, tag = 'scratch operand']
  %s0 = inlined_call_operand.vmem [shape: f32[64,4], index: 0, kind: input, shape index: {}]
  %s1 = inlined_call_operand.vmem [shape: f32[4,4], index: 1, kind: input, shape index: {}]
  %s2 = inlined_call_operand.vmem [shape: f32[1,4], index: 2, kind: input, shape index: {}]
  %s3 = inlined_call_operand.vmem [shape: f32[8,4], index: 3, kind: output, shape index: {}]
  %s4 = sld [smem:[#allocation0]]
  $region26: #{my_rnn_loop_forward.1} parent=0
    _
  %s6 = ssub.s32 1, %s4
  %s7 = scalar_select 0, %s6, %s4
  // Predicated region
  $region2: #{my_rnn_loop_forward.1} parent=0 // pred_check
    _
  $region3: #{my_rnn_loop_forward.1} parent=0 // pred_check_branch
    %9 = sbr.rel (0) target = $region5
  $region4: #{my_rnn_loop_forward.1} parent=0 // pred_region
    _
  $region5: #{my_rnn_loop_forward.1} parent=0 // pred_fallthru
    _
  // Predicated region
  $region6: #{my_rnn_loop_forward.1} parent=0 // pred_check
    _
  $region7: #{my_rnn_loop_forward.1} parent=0 // pred_check_branch
    %11 = sbr.rel (0) target = $region9
  $region8: #{my_rnn_loop_forward.1} parent=0 // pred_region
    _
  $region9: #{my_rnn_loop_forward.1} parent=0 // pred_fallthru
    _
  // Predicated region
  $region10: #{my_rnn_loop_forward.1} parent=0 // pred_check
    _
  $region11: #{my_rnn_loop_forward.1} parent=0 // pred_check_branch
    %13 = sbr.rel (0) target = $region13
  $region12: #{my_rnn_loop_forward.1} parent=0 // pred_region
    _
  $region13: #{my_rnn_loop_forward.1} parent=0 // pred_fallthru
    _
  %p14 = scmp.eq.s32.totalorder 0, 0
  // Predicated region
  $region14: #{my_rnn_loop_forward.1} parent=0 // pred_check
    %p15 = pneg %p14
  $region15: #{my_rnn_loop_forward.1} parent=0 // pred_check_branch
    %17 = sbr.rel (%p15) target = $region17
  $region16: #{my_rnn_loop_forward.1} parent=0 // pred_region
    %vm18 = vcmask 31744
    %19 = vst.msk [vmem:[%s3] sm:$0xff] %vm18, 0.0
  $region17: #{my_rnn_loop_forward.1} parent=0 // pred_fallthru
    _
  %v20 = vld [vmem:[%s0] sm:$0xff]
  %v21 = vld [vmem:[%s0 + $0x8] sm:$0xff]
  %v22 = vld [vmem:[%s0 + $0x10] sm:$0xff]
  %v23 = vld [vmem:[%s0 + $0x18] sm:$0xff]
  %v24 = vld [vmem:[%s0 + $0x20] sm:$0xff]
  %v25 = vld [vmem:[%s0 + $0x28] sm:$0xff]
  %v26 = vld [vmem:[%s0 + $0x30] sm:$0xff]
  %v27 = vld [vmem:[%s0 + $0x38] sm:$0xff]
  %v28 = vld [vmem:[%s1] sm:$0x1]
  %30 = vset.pattern.permute.xlu0 0
  %31 = vperm.xlu0 %30, %v20
  %v32 = vpop.permute.xlu0 %31
  %35 = vset.pattern.permute.xlu0 0
  %36 = vperm.xlu0 %35, %v21
  %v37 = vpop.permute.xlu0 %36
  %40 = vset.pattern.permute.xlu0 0
  %41 = vperm.xlu0 %40, %v22
  %v42 = vpop.permute.xlu0 %41
  %45 = vset.pattern.permute.xlu0 0
  %46 = vperm.xlu0 %45, %v23
  %v47 = vpop.permute.xlu0 %46
  %50 = vset.pattern.permute.xlu0 0
  %51 = vperm.xlu0 %50, %v24
  %v52 = vpop.permute.xlu0 %51
  %55 = vset.pattern.permute.xlu0 0
  %56 = vperm.xlu0 %55, %v25
  %v57 = vpop.permute.xlu0 %56
  %60 = vset.pattern.permute.xlu0 0
  %61 = vperm.xlu0 %60, %v26
  %v62 = vpop.permute.xlu0 %61
  %65 = vset.pattern.permute.xlu0 0
  %66 = vperm.xlu0 %65, %v27
  %v67 = vpop.permute.xlu0 %66
  %v69 = vlaneseq
  %v70 = vshrl.u32 %v69, 7
  %v71 = vsub.s32 0, %v70
  %v72 = vrot.slane %v28, %v71
  %v73 = vmul.f32 %v32, %v72
  %v74 = vmul.f32 %v37, %v72
  %v75 = vmul.f32 %v42, %v72
  %v76 = vmul.f32 %v47, %v72
  %v77 = vmul.f32 %v52, %v72
  %v78 = vmul.f32 %v57, %v72
  %v79 = vmul.f32 %v62, %v72
  %v80 = vmul.f32 %v67, %v72
  %v81 = vld [vmem:[%s2] sm:$0x1]
  %v83 = vlaneseq
  %v84 = vshrl.u32 %v83, 7
  %v85 = vsub.s32 0, %v84
  %v86 = vrot.slane %v81, %v85
  %v88 = vadd.f32 %v73, %v86
  %v89 = vadd.f32 %v74, %v86
  %v90 = vadd.f32 %v75, %v86
  %v91 = vadd.f32 %v76, %v86
  %v92 = vadd.f32 %v77, %v86
  %v93 = vadd.f32 %v78, %v86
  %v94 = vadd.f32 %v79, %v86
  %v95 = vadd.f32 %v80, %v86
  %v96 = vld [vmem:[%s1 + $0x1] sm:$0x1]
  %97 = vset.pattern.permute.xlu0 1
  %98 = vperm.xlu0 %97, %v20
  %v99 = vpop.permute.xlu0 %98
  %101 = vset.pattern.permute.xlu0 1
  %102 = vperm.xlu0 %101, %v21
  %v103 = vpop.permute.xlu0 %102
  %105 = vset.pattern.permute.xlu0 1
  %106 = vperm.xlu0 %105, %v22
  %v107 = vpop.permute.xlu0 %106
  %109 = vset.pattern.permute.xlu0 1
  %110 = vperm.xlu0 %109, %v23
  %v111 = vpop.permute.xlu0 %110
  %113 = vset.pattern.permute.xlu0 1
  %114 = vperm.xlu0 %113, %v24
  %v115 = vpop.permute.xlu0 %114
  %117 = vset.pattern.permute.xlu0 1
  %118 = vperm.xlu0 %117, %v25
  %v119 = vpop.permute.xlu0 %118
  %121 = vset.pattern.permute.xlu0 1
  %122 = vperm.xlu0 %121, %v26
  %v123 = vpop.permute.xlu0 %122
  %125 = vset.pattern.permute.xlu0 1
  %126 = vperm.xlu0 %125, %v27
  %v127 = vpop.permute.xlu0 %126
  %v129 = vlaneseq
  %v130 = vshrl.u32 %v129, 7
  %v131 = vsub.s32 0, %v130
  %v132 = vrot.slane %v96, %v131
  %v133 = vmul.f32 %v99, %v132
  %v134 = vmul.f32 %v103, %v132
  %v135 = vmul.f32 %v107, %v132
  %v136 = vmul.f32 %v111, %v132
  %v137 = vmul.f32 %v115, %v132
  %v138 = vmul.f32 %v119, %v132
  %v139 = vmul.f32 %v123, %v132
  %v140 = vmul.f32 %v127, %v132
  %v141 = vadd.f32 %v88, %v133
  %v142 = vadd.f32 %v89, %v134
  %v143 = vadd.f32 %v90, %v135
  %v144 = vadd.f32 %v91, %v136
  %v145 = vadd.f32 %v92, %v137
  %v146 = vadd.f32 %v93, %v138
  %v147 = vadd.f32 %v94, %v139
  %v148 = vadd.f32 %v95, %v140
  %v149 = vld [vmem:[%s1 + $0x2] sm:$0x1]
  %150 = vset.pattern.permute.xlu0 2
  %151 = vperm.xlu0 %150, %v20
  %v152 = vpop.permute.xlu0 %151
  %154 = vset.pattern.permute.xlu0 2
  %155 = vperm.xlu0 %154, %v21
  %v156 = vpop.permute.xlu0 %155
  %158 = vset.pattern.permute.xlu0 2
  %159 = vperm.xlu0 %158, %v22
  %v160 = vpop.permute.xlu0 %159
  %162 = vset.pattern.permute.xlu0 2
  %163 = vperm.xlu0 %162, %v23
  %v164 = vpop.permute.xlu0 %163
  %166 = vset.pattern.permute.xlu0 2
  %167 = vperm.xlu0 %166, %v24
  %v168 = vpop.permute.xlu0 %167
  %170 = vset.pattern.permute.xlu0 2
  %171 = vperm.xlu0 %170, %v25
  %v172 = vpop.permute.xlu0 %171
  %174 = vset.pattern.permute.xlu0 2
  %175 = vperm.xlu0 %174, %v26
  %v176 = vpop.permute.xlu0 %175
  %178 = vset.pattern.permute.xlu0 2
  %179 = vperm.xlu0 %178, %v27
  %v180 = vpop.permute.xlu0 %179
  %v182 = vlaneseq
  %v183 = vshrl.u32 %v182, 7
  %v184 = vsub.s32 0, %v183
  %v185 = vrot.slane %v149, %v184
  %v186 = vmul.f32 %v152, %v185
  %v187 = vmul.f32 %v156, %v185
  %v188 = vmul.f32 %v160, %v185
  %v189 = vmul.f32 %v164, %v185
  %v190 = vmul.f32 %v168, %v185
  %v191 = vmul.f32 %v172, %v185
  %v192 = vmul.f32 %v176, %v185
  %v193 = vmul.f32 %v180, %v185
  %v194 = vadd.f32 %v141, %v186
  %v195 = vadd.f32 %v142, %v187
  %v196 = vadd.f32 %v143, %v188
  %v197 = vadd.f32 %v144, %v189
  %v198 = vadd.f32 %v145, %v190
  %v199 = vadd.f32 %v146, %v191
  %v200 = vadd.f32 %v147, %v192
  %v201 = vadd.f32 %v148, %v193
  %v202 = vld [vmem:[%s1 + $0x3] sm:$0x1]
  %203 = vset.pattern.permute.xlu0 3
  %204 = vperm.xlu0 %203, %v20
  %v205 = vpop.permute.xlu0 %204
  %207 = vset.pattern.permute.xlu0 3
  %208 = vperm.xlu0 %207, %v21
  %v209 = vpop.permute.xlu0 %208
  %211 = vset.pattern.permute.xlu0 3
  %212 = vperm.xlu0 %211, %v22
  %v213 = vpop.permute.xlu0 %212
  %215 = vset.pattern.permute.xlu0 3
  %216 = vperm.xlu0 %215, %v23
  %v217 = vpop.permute.xlu0 %216
  %219 = vset.pattern.permute.xlu0 3
  %220 = vperm.xlu0 %219, %v24
  %v221 = vpop.permute.xlu0 %220
  %223 = vset.pattern.permute.xlu0 3
  %224 = vperm.xlu0 %223, %v25
  %v225 = vpop.permute.xlu0 %224
  %227 = vset.pattern.permute.xlu0 3
  %228 = vperm.xlu0 %227, %v26
  %v229 = vpop.permute.xlu0 %228
  %231 = vset.pattern.permute.xlu0 3
  %232 = vperm.xlu0 %231, %v27
  %v233 = vpop.permute.xlu0 %232
  %v235 = vlaneseq
  %v236 = vshrl.u32 %v235, 7
  %v237 = vsub.s32 0, %v236
  %v238 = vrot.slane %v202, %v237
  %v239 = vmul.f32 %v205, %v238
  %v240 = vmul.f32 %v209, %v238
  %v241 = vmul.f32 %v213, %v238
  %v242 = vmul.f32 %v217, %v238
  %v243 = vmul.f32 %v221, %v238
  %v244 = vmul.f32 %v225, %v238
  %v245 = vmul.f32 %v229, %v238
  %v246 = vmul.f32 %v233, %v238
  %v247 = vadd.f32 %v194, %v239
  %v248 = vadd.f32 %v195, %v240
  %v249 = vadd.f32 %v196, %v241
  %v250 = vadd.f32 %v197, %v242
  %v251 = vadd.f32 %v198, %v243
  %v252 = vadd.f32 %v199, %v244
  %v253 = vadd.f32 %v200, %v245
  %v254 = vadd.f32 %v201, %v246
  %vm255 = vcmask 31744
  %256 = vst.msk [vmem:[#allocation2] sm:$0xff] %vm255, %v247
  %257 = vst.msk [vmem:[#allocation2 + $0x8] sm:$0xff] %vm255, %v248
  %258 = vst.msk [vmem:[#allocation2 + $0x10] sm:$0xff] %vm255, %v249
  %259 = vst.msk [vmem:[#allocation2 + $0x18] sm:$0xff] %vm255, %v250
  %260 = vst.msk [vmem:[#allocation2 + $0x20] sm:$0xff] %vm255, %v251
  %261 = vst.msk [vmem:[#allocation2 + $0x28] sm:$0xff] %vm255, %v252
  %262 = vst.msk [vmem:[#allocation2 + $0x30] sm:$0xff] %vm255, %v253
  %263 = vst.msk [vmem:[#allocation2 + $0x38] sm:$0xff] %vm255, %v254
  %v264 = vld [vmem:[%s3] sm:$0xff]
  %v265 = vld [vmem:[#allocation2] sm:$0xff]
  %v266 = vadd.f32 %v265, %v264
  %v267 = vtanh.pop %v266
  %v268 = vld [vmem:[#allocation2 + $0x8] sm:$0xff]
  %v269 = vadd.f32 %v268, %v267
  %v270 = vtanh.pop %v269
  %v271 = vld [vmem:[#allocation2 + $0x10] sm:$0xff]
  %v272 = vadd.f32 %v271, %v270
  %v273 = vtanh.pop %v272
  %v274 = vld [vmem:[#allocation2 + $0x18] sm:$0xff]
  %v275 = vadd.f32 %v274, %v273
  %v276 = vtanh.pop %v275
  %v277 = vld [vmem:[#allocation2 + $0x20] sm:$0xff]
  %v278 = vadd.f32 %v277, %v276
  %v279 = vtanh.pop %v278
  %v280 = vld [vmem:[#allocation2 + $0x28] sm:$0xff]
  %v281 = vadd.f32 %v280, %v279
  %v282 = vtanh.pop %v281
  %v283 = vld [vmem:[#allocation2 + $0x30] sm:$0xff]
  %v284 = vadd.f32 %v283, %v282
  %v285 = vtanh.pop %v284
  %v286 = vld [vmem:[#allocation2 + $0x38] sm:$0xff]
  %v287 = vadd.f32 %v286, %v285
  %v288 = vtanh.pop %v287
  %289 = vst.msk [vmem:[%s3] sm:$0xff] %vm255, %v288
  // Predicated region
  $region18: #{my_rnn_loop_forward.1} parent=0 // pred_check
    _
  $region19: #{my_rnn_loop_forward.1} parent=0 // pred_check_branch
    %291 = sbr.rel (0) target = $region21
  $region20: #{my_rnn_loop_forward.1} parent=0 // pred_region
    _
  $region21: #{my_rnn_loop_forward.1} parent=0 // pred_fallthru
    _
  // Predicated region
  $region22: #{my_rnn_loop_forward.1} parent=0 // pred_check
    _
  $region23: #{my_rnn_loop_forward.1} parent=0 // pred_check_branch
    %293 = sbr.rel (0) target = $region25
  $region24: #{my_rnn_loop_forward.1} parent=0 // pred_region
    _
  $region25: #{my_rnn_loop_forward.1} parent=0 // pred_fallthru
    _

</llo_original>
